<compile_context>
chip_gen: v7x
topology: tpu7x:2x2x1
jax: 0.10.0
libtpu: 0.0.40
codegen_flags: <defaults>
</compile_context>

<pallas_src>
from functools import partial

import jax
import jax.numpy as jnp
from jax.experimental import pallas as pl
from jax.experimental.pallas import tpu as pltpu

HIDDEN = 128
IN_FEATURES = 4
CHUNK = 512  # lane-chunk for the fused layer1+layer2 body (keeps h in vregs)


def mlp_kernel(x8_ref, wblk_ref, bblk_ref, w2blk_ref, b2_ref, o_ref):
    # x8_ref:   (8, TBh)   sublanes 0-3 = batch-half-A features, 4-7 = half B
    # wblk_ref: (256, 8)   block-diagonal [[W1, 0], [0, W1]]
    # bblk_ref: (256, 1)   [b1; b1]
    # w2blk_ref:(256, 1)   [w2; w2]
    # b2_ref:   (1, 1)     scalar bias, SMEM
    # o_ref:    (2, TBh)   row 0 = outputs for half A, row 1 = half B
    wblk = wblk_ref[...]
    bblk = bblk_ref[...]
    w2b = w2blk_ref[...]
    b2 = b2_ref[0, 0]

    tbh = x8_ref.shape[1]
    ch = CHUNK if tbh % CHUNK == 0 else tbh
    n_chunks = tbh // ch

    def body(c, carry):
        start = pl.multiple_of(c * ch, ch)
        xs = x8_ref[:, pl.ds(start, ch)]                               # (8, ch)

        # Layer 1 for both batch halves at once on the MXU (f32 accumulation).
        h = jnp.dot(wblk, xs, preferred_element_type=jnp.float32)      # (256, ch)
        h = jnp.maximum(h + bblk, 0.0)                                 # bias + ReLU

        # Layer 2 on the VPU/XLU: scale by w2 and reduce the 128 hidden units
        # (sublanes) of each half.  Avoids an N=1 MXU matmul entirely.
        hw = h * w2b                                                   # (256, ch)
        y_a = jnp.sum(hw[:HIDDEN, :], axis=0, keepdims=True) + b2      # (1, ch)
        y_b = jnp.sum(hw[HIDDEN:, :], axis=0, keepdims=True) + b2      # (1, ch)
        y = jnp.concatenate([y_a, y_b], axis=0)                        # (2, ch)

        o_ref[:, pl.ds(start, ch)] = y.astype(o_ref.dtype)
        return carry

    jax.lax.fori_loop(0, n_chunks, body, 0, unroll=True)


def _round_up(n, m):
    return ((n + m - 1) // m) * m


@partial(jax.jit, static_argnames=("tb",))
def mlp_forward(x, w1, b1, w2, b2, *, tb=8192):
    """x: (B, 4) f32.  Returns (B, 1), matching the PyTorch module."""
    B = x.shape[0]

    # Half-batch size, padded so each half is a multiple of 128 lanes.
    bh_min = _round_up(max(B, 1), 256) // 2
    tbh_cap = max(128, (tb // 2) // 128 * 128)
    if bh_min <= 128:
        tbh = 128                      # single tile (tiny batch)
    else:
        # At least 2 tiles so both v7x TensorCores get work.
        tbh = min(tbh_cap, _round_up(pl.cdiv(bh_min, 2), 128))
    num_tiles = pl.cdiv(bh_min, tbh)
    bh = num_tiles * tbh
    b_pad = 2 * bh

    # Pack the two batch halves into the 8 sublanes: (8, bh) with
    # sublanes 0-3 = features of batches [0, bh), 4-7 = batches [bh, 2*bh).
    x_pad = jnp.pad(x, ((0, b_pad - B), (0, 0)))
    x8 = jnp.transpose(
        x_pad.reshape(2, bh, IN_FEATURES), (0, 2, 1)
    ).reshape(2 * IN_FEATURES, bh)

    # Block-diagonal layer-1 weight so one MXU dot serves both halves.
    zero = jnp.zeros_like(w1)
    w_blk = jnp.concatenate(
        [jnp.concatenate([w1, zero], axis=1),
         jnp.concatenate([zero, w1], axis=1)], axis=0)                 # (256, 8)
    b_blk = jnp.concatenate([b1, b1]).reshape(2 * HIDDEN, 1)           # (256, 1)
    w2_row = w2.reshape(HIDDEN)
    w2_blk = jnp.concatenate([w2_row, w2_row]).reshape(2 * HIDDEN, 1)  # (256, 1)
    b2_s = b2.reshape(1, 1)

    out2 = pl.pallas_call(
        mlp_kernel,
        out_shape=jax.ShapeDtypeStruct((2, bh), x.dtype),
        grid_spec=pltpu.PrefetchScalarGridSpec(
            num_scalar_prefetch=0,
            grid=(num_tiles,),
            in_specs=[
                # Packed x tile marches along the lane (half-batch) axis.
                pl.BlockSpec((2 * IN_FEATURES, tbh), lambda i: (0, i)),
                # Tiny parameters stay VMEM-resident (constant block index).
                pl.BlockSpec((2 * HIDDEN, 2 * IN_FEATURES), lambda i: (0, 0)),
                pl.BlockSpec((2 * HIDDEN, 1), lambda i: (0, 0)),
                pl.BlockSpec((2 * HIDDEN, 1), lambda i: (0, 0)),
                # Scalar bias lives in SMEM.
                pl.BlockSpec(memory_space=pltpu.MemorySpace.SMEM),
            ],
            out_specs=pl.BlockSpec((2, tbh), lambda i: (0, i)),
        ),
        compiler_params=pltpu.CompilerParams(
            dimension_semantics=("parallel",),
        ),
    )(x8, w_blk, b_blk, w2_blk, b2_s)                                  # (2, bh)

    # Row-major flatten restores batch order: [half A ..., half B ...].
    return out2.reshape(-1)[:B].reshape(B, 1)


def init_params(key):
    """Deterministic init matching PyTorch nn.Linear defaults (U(+-1/sqrt(fan_in)))."""
    k1, k2, k3, k4 = jax.random.split(key, 4)
    bound1 = 1.0 / jnp.sqrt(float(IN_FEATURES))
    bound2 = 1.0 / jnp.sqrt(float(HIDDEN))
    w1 = jax.random.uniform(k1, (HIDDEN, IN_FEATURES), jnp.float32, -bound1, bound1)
    b1 = jax.random.uniform(k2, (HIDDEN,), jnp.float32, -bound1, bound1)
    w2 = jax.random.uniform(k3, (1, HIDDEN), jnp.float32, -bound2, bound2)
    b2 = jax.random.uniform(k4, (1,), jnp.float32, -bound2, bound2)
    return w1, b1, w2, b2


def reference(x, w1, b1, w2, b2):
    return jnp.maximum(x @ w1.T + b1, 0.0) @ w2.T + b2


if __name__ == "__main__":
    key = jax.random.PRNGKey(0)
    kx1, kx2, kx3, kp = jax.random.split(key, 4)
    w1, b1, w2, b2 = init_params(kp)

    # Small batch: single-tile path (padded to a lane-dense 2x128 slab).
    x1 = jax.random.normal(kx1, (8, IN_FEATURES), jnp.float32)
    o1 = mlp_forward(x1, w1, b1, w2, b2)
    jax.block_until_ready(o1)
    assert o1.shape == (8, 1)
    assert jnp.allclose(o1, reference(x1, w1, b1, w2, b2), atol=1e-4, rtol=1e-4)

    # Mid batch: exercises batch padding and the >=2-tile (megacore) path.
    x2 = jax.random.normal(kx2, (300, IN_FEATURES), jnp.float32)
    o2 = mlp_forward(x2, w1, b1, w2, b2)
    jax.block_until_ready(o2)
    assert o2.shape == (300, 1)
    assert jnp.allclose(o2, reference(x2, w1, b1, w2, b2), atol=1e-4, rtol=1e-4)

    # Larger batch: exercises the in-kernel lane-chunk loop (n_chunks > 1).
    x3 = jax.random.normal(kx3, (4096, IN_FEATURES), jnp.float32)
    o3 = mlp_forward(x3, w1, b1, w2, b2)
    jax.block_until_ready(o3)
    assert o3.shape == (4096, 1)
    assert jnp.allclose(o3, reference(x3, w1, b1, w2, b2), atol=1e-4, rtol=1e-4)

    print("KERNEL_OK")
</pallas_src>

<mosaic_0001>
module attributes {stable_mosaic.version = 11 : i64} {
  func.func @mlp_kernel(%arg0: i32, %arg1: memref<8x128xf32, #tpu.memory_space<vmem>>, %arg2: memref<256x8xf32, #tpu.memory_space<vmem>>, %arg3: memref<256x1xf32, #tpu.memory_space<vmem>>, %arg4: memref<256x1xf32, #tpu.memory_space<vmem>>, %arg5: memref<1x1xf32, #tpu.memory_space<smem>>, %arg6: memref<2x128xf32, #tpu.memory_space<vmem>>) attributes {dimension_semantics = [#tpu.dimension_semantics<parallel>], iteration_bounds = array<i64: 1>, scalar_prefetch = 0 : i64, scratch_operands = 0 : i64, tpu.core_type = #tpu.core_type<tc>, window_params = [{transform_indices = @transform_0, window_bounds = array<i64: 8, 128>}, {pipeline_mode = #tpu.pipeline_mode<synchronous>, transform_indices = @transform_1, window_bounds = array<i64: 256, 8>}, {pipeline_mode = #tpu.pipeline_mode<synchronous>, transform_indices = @transform_2, window_bounds = array<i64: 256, 1>}, {pipeline_mode = #tpu.pipeline_mode<synchronous>, transform_indices = @transform_3, window_bounds = array<i64: 256, 1>}, {transform_indices = @transform_4, window_bounds = array<i64: 1, 1>}, {transform_indices = @transform_5, window_bounds = array<i64: 2, 128>}]} {
    %c0 = arith.constant 0 : index
    %c0_0 = arith.constant 0 : index
    %0 = vector.load %arg2[%c0, %c0_0] : memref<256x8xf32, #tpu.memory_space<vmem>>, vector<256x8xf32>
    %c0_1 = arith.constant 0 : index
    %c0_2 = arith.constant 0 : index
    %1 = vector.load %arg3[%c0_1, %c0_2] : memref<256x1xf32, #tpu.memory_space<vmem>>, vector<256x1xf32>
    %c0_3 = arith.constant 0 : index
    %c0_4 = arith.constant 0 : index
    %2 = vector.load %arg4[%c0_3, %c0_4] : memref<256x1xf32, #tpu.memory_space<vmem>>, vector<256x1xf32>
    %c0_5 = arith.constant 0 : index
    %c0_6 = arith.constant 0 : index
    %3 = memref.load %arg5[%c0_5, %c0_6] : memref<1x1xf32, #tpu.memory_space<smem>>
    %c0_i32 = arith.constant 0 : i32
    %c128_i32 = arith.constant 128 : i32
    %4 = arith.muli %c0_i32, %c128_i32 : i32
    %5 = tpu.assume_multiple %4, 128 : i32
    %c0_7 = arith.constant 0 : index
    %6 = arith.index_cast %5 : i32 to index
    %7 = vector.load %arg1[%c0_7, %6] : memref<8x128xf32, #tpu.memory_space<vmem>>, vector<8x128xf32>
    %cst = arith.constant dense<0.000000e+00> : vector<256x128xf32>
    %8 = tpu.matmul %0, %7, %cst {dimension_numbers = #tpu.dot_dimension_numbers<[1], [0], [0], [1], [0, 0, 1, 1], [], []>} : vector<256x8xf32>, vector<8x128xf32>, vector<256x128xf32> -> vector<256x128xf32>
    %9 = vector.broadcast %1 : vector<256x1xf32> to vector<256x128xf32>
    %10 = arith.addf %8, %9 : vector<256x128xf32>
    %cst_8 = arith.constant 0.000000e+00 : f32
    %11 = vector.broadcast %cst_8 : f32 to vector<256x128xf32>
    %12 = arith.maximumf %10, %11 : vector<256x128xf32>
    %13 = vector.broadcast %2 : vector<256x1xf32> to vector<256x128xf32>
    %14 = arith.mulf %12, %13 : vector<256x128xf32>
    %15 = vector.extract_strided_slice %14 {offsets = [0, 0], sizes = [128, 128], strides = [1, 1]} : vector<256x128xf32> to vector<128x128xf32>
    %cst_9 = arith.constant dense<0.000000e+00> : vector<128xf32>
    %16 = vector.multi_reduction <add>, %15, %cst_9 [0] : vector<128x128xf32> to vector<128xf32>
    %17 = vector.shape_cast %16 : vector<128xf32> to vector<1x128xf32>
    %18 = vector.broadcast %3 : f32 to vector<1x128xf32>
    %19 = arith.addf %17, %18 : vector<1x128xf32>
    %20 = vector.extract_strided_slice %14 {offsets = [128, 0], sizes = [128, 128], strides = [1, 1]} : vector<256x128xf32> to vector<128x128xf32>
    %cst_10 = arith.constant dense<0.000000e+00> : vector<128xf32>
    %21 = vector.multi_reduction <add>, %20, %cst_10 [0] : vector<128x128xf32> to vector<128xf32>
    %22 = vector.shape_cast %21 : vector<128xf32> to vector<1x128xf32>
    %23 = vector.broadcast %3 : f32 to vector<1x128xf32>
    %24 = arith.addf %22, %23 : vector<1x128xf32>
    %25 = tpu.concatenate %19, %24 in 0 : vector<1x128xf32>, vector<1x128xf32> -> vector<2x128xf32>
    %c0_11 = arith.constant 0 : index
    %26 = arith.index_cast %5 : i32 to index
    %27 = vector.load %arg6[%c0_11, %26] : memref<2x128xf32, #tpu.memory_space<vmem>>, vector<2x128xf32>
    tpu.vector_store %arg6[%c0_11, %26], %25 {strides = array<i32>} : memref<2x128xf32, #tpu.memory_space<vmem>>, vector<2x128xf32>,
    %c1_i32 = arith.constant 1 : i32
    return
  }
  func.func @transform_0(%arg0: i32) -> (i32, i32) {
    %c0_i32 = arith.constant 0 : i32
    %c0_i32_0 = arith.constant 0 : i32
    return %c0_i32, %arg0 : i32, i32
  }
  func.func @transform_1(%arg0: i32) -> (i32, i32) {
    %c0_i32 = arith.constant 0 : i32
    %c0_i32_0 = arith.constant 0 : i32
    %c0_i32_1 = arith.constant 0 : i32
    return %c0_i32, %c0_i32_0 : i32, i32
  }
  func.func @transform_2(%arg0: i32) -> (i32, i32) {
    %c0_i32 = arith.constant 0 : i32
    %c0_i32_0 = arith.constant 0 : i32
    %c0_i32_1 = arith.constant 0 : i32
    return %c0_i32, %c0_i32_0 : i32, i32
  }
  func.func @transform_3(%arg0: i32) -> (i32, i32) {
    %c0_i32 = arith.constant 0 : i32
    %c0_i32_0 = arith.constant 0 : i32
    %c0_i32_1 = arith.constant 0 : i32
    return %c0_i32, %c0_i32_0 : i32, i32
  }
  func.func @transform_4(%arg0: i32) -> (i32, i32) {
    %c0_i32 = arith.constant 0 : i32
    %c0_i32_0 = arith.constant 0 : i32
    %c0_i32_1 = arith.constant 0 : i32
    return %c0_i32, %c0_i32_0 : i32, i32
  }
  func.func @transform_5(%arg0: i32) -> (i32, i32) {
    %c0_i32 = arith.constant 0 : i32
    %c0_i32_0 = arith.constant 0 : i32
    return %c0_i32, %arg0 : i32, i32
  }
}

</mosaic_0001>

<llo_original>
// kernel: mlp_forward.1
$region0: #{mlp_forward.1}
  #allocation0 [shape = 'u32[]', space=smem, size = 0x4, offset = 0x4, fixed_abs, tag = 'smem constant byte address 0x4 - core index']
  #allocation1 [shape = 'u32[144,128]{1,0:T(1,128)}', space=vmem, size = 0x12000, scoped, tag = 'internal scratch']
  #allocation2 [shape = 'f32[1,1]{1,0:T(1,128)S(6)}', space=smem, size = 0x200, scoped, tag = 'scoped memory for mlp_forward.1']
  %s0 = inlined_call_operand.vmem [shape: f32[8,128], index: 0, kind: input, shape index: {}]
  %s1 = inlined_call_operand.vmem [shape: f32[256,8], index: 1, kind: input, shape index: {}]
  %s2 = inlined_call_operand.vmem [shape: f32[256,1], index: 2, kind: input, shape index: {}]
  %s3 = inlined_call_operand.vmem [shape: f32[256,1], index: 3, kind: input, shape index: {}]
  %s4 = inlined_call_operand.<no memory space> [shape: f32[1,1], index: 4, kind: input, shape index: {}]
  %s5 = inlined_call_operand.vmem [shape: f32[2,128], index: 5, kind: output, shape index: {}]
  %s6 = sld [smem:[#allocation0]]
  $region30: #{mlp_forward.1} parent=0
    _
  %s8 = ssub.s32 1, %s6
  %s9 = scalar_select 0, %s8, %s6
  %10 = sst [smem:[#allocation2]] %s4
  // Predicated region
  $region2: #{mlp_forward.1} parent=0 // pred_check
    _
  $region3: #{mlp_forward.1} parent=0 // pred_check_branch
    %12 = sbr.rel (0) target = $region5
  $region4: #{mlp_forward.1} parent=0 // pred_region
    _
  $region5: #{mlp_forward.1} parent=0 // pred_fallthru
    _
  // Predicated region
  $region6: #{mlp_forward.1} parent=0 // pred_check
    _
  $region7: #{mlp_forward.1} parent=0 // pred_check_branch
    %14 = sbr.rel (0) target = $region9
  $region8: #{mlp_forward.1} parent=0 // pred_region
    _
  $region9: #{mlp_forward.1} parent=0 // pred_fallthru
    _
  // Predicated region
  $region10: #{mlp_forward.1} parent=0 // pred_check
    _
  $region11: #{mlp_forward.1} parent=0 // pred_check_branch
    %16 = sbr.rel (0) target = $region13
  $region12: #{mlp_forward.1} parent=0 // pred_region
    _
  $region13: #{mlp_forward.1} parent=0 // pred_fallthru
    _
  // Predicated region
  $region14: #{mlp_forward.1} parent=0 // pred_check
    _
  $region15: #{mlp_forward.1} parent=0 // pred_check_branch
    %18 = sbr.rel (0) target = $region17
  $region16: #{mlp_forward.1} parent=0 // pred_region
    _
  $region17: #{mlp_forward.1} parent=0 // pred_fallthru
    _
  // Predicated region
  $region18: #{mlp_forward.1} parent=0 // pred_check
    _
  $region19: #{mlp_forward.1} parent=0 // pred_check_branch
    %20 = sbr.rel (0) target = $region21
  $region20: #{mlp_forward.1} parent=0 // pred_region
    _
  $region21: #{mlp_forward.1} parent=0 // pred_fallthru
    _
  %v21 = vld [vmem:[%s1] sm:$0xff]
  %v22 = vld [vmem:[%s1 + $0x8] sm:$0xff]
  %v23 = vld [vmem:[%s1 + $0x10] sm:$0xff]
  %v24 = vld [vmem:[%s1 + $0x18] sm:$0xff]
  %v25 = vld [vmem:[%s1 + $0x20] sm:$0xff]
  %v26 = vld [vmem:[%s1 + $0x28] sm:$0xff]
  %v27 = vld [vmem:[%s1 + $0x30] sm:$0xff]
  %v28 = vld [vmem:[%s1 + $0x38] sm:$0xff]
  %v29 = vld [vmem:[%s1 + $0x40] sm:$0xff]
  %v30 = vld [vmem:[%s1 + $0x48] sm:$0xff]
  %v31 = vld [vmem:[%s1 + $0x50] sm:$0xff]
  %v32 = vld [vmem:[%s1 + $0x58] sm:$0xff]
  %v33 = vld [vmem:[%s1 + $0x60] sm:$0xff]
  %v34 = vld [vmem:[%s1 + $0x68] sm:$0xff]
  %v35 = vld [vmem:[%s1 + $0x70] sm:$0xff]
  %v36 = vld [vmem:[%s1 + $0x78] sm:$0xff]
  %v37 = vld [vmem:[%s1 + $0x80] sm:$0xff]
  %v38 = vld [vmem:[%s1 + $0x88] sm:$0xff]
  %v39 = vld [vmem:[%s1 + $0x90] sm:$0xff]
  %v40 = vld [vmem:[%s1 + $0x98] sm:$0xff]
  %v41 = vld [vmem:[%s1 + $0xa0] sm:$0xff]
  %v42 = vld [vmem:[%s1 + $0xa8] sm:$0xff]
  %v43 = vld [vmem:[%s1 + $0xb0] sm:$0xff]
  %v44 = vld [vmem:[%s1 + $0xb8] sm:$0xff]
  %v45 = vld [vmem:[%s1 + $0xc0] sm:$0xff]
  %v46 = vld [vmem:[%s1 + $0xc8] sm:$0xff]
  %v47 = vld [vmem:[%s1 + $0xd0] sm:$0xff]
  %v48 = vld [vmem:[%s1 + $0xd8] sm:$0xff]
  %v49 = vld [vmem:[%s1 + $0xe0] sm:$0xff]
  %v50 = vld [vmem:[%s1 + $0xe8] sm:$0xff]
  %v51 = vld [vmem:[%s1 + $0xf0] sm:$0xff]
  %v52 = vld [vmem:[%s1 + $0xf8] sm:$0xff]
  %v53 = vld [vmem:[%s2] sm:$0xff]
  %v54 = vld [vmem:[%s2 + $0x8] sm:$0xff]
  %v55 = vld [vmem:[%s2 + $0x10] sm:$0xff]
  %v56 = vld [vmem:[%s2 + $0x18] sm:$0xff]
  %v57 = vld [vmem:[%s2 + $0x20] sm:$0xff]
  %v58 = vld [vmem:[%s2 + $0x28] sm:$0xff]
  %v59 = vld [vmem:[%s2 + $0x30] sm:$0xff]
  %v60 = vld [vmem:[%s2 + $0x38] sm:$0xff]
  %v61 = vld [vmem:[%s2 + $0x40] sm:$0xff]
  %v62 = vld [vmem:[%s2 + $0x48] sm:$0xff]
  %v63 = vld [vmem:[%s2 + $0x50] sm:$0xff]
  %v64 = vld [vmem:[%s2 + $0x58] sm:$0xff]
  %v65 = vld [vmem:[%s2 + $0x60] sm:$0xff]
  %v66 = vld [vmem:[%s2 + $0x68] sm:$0xff]
  %v67 = vld [vmem:[%s2 + $0x70] sm:$0xff]
  %v68 = vld [vmem:[%s2 + $0x78] sm:$0xff]
  %v69 = vld [vmem:[%s2 + $0x80] sm:$0xff]
  %v70 = vld [vmem:[%s2 + $0x88] sm:$0xff]
  %v71 = vld [vmem:[%s2 + $0x90] sm:$0xff]
  %v72 = vld [vmem:[%s2 + $0x98] sm:$0xff]
  %v73 = vld [vmem:[%s2 + $0xa0] sm:$0xff]
  %v74 = vld [vmem:[%s2 + $0xa8] sm:$0xff]
  %v75 = vld [vmem:[%s2 + $0xb0] sm:$0xff]
  %v76 = vld [vmem:[%s2 + $0xb8] sm:$0xff]
  %v77 = vld [vmem:[%s2 + $0xc0] sm:$0xff]
  %v78 = vld [vmem:[%s2 + $0xc8] sm:$0xff]
  %v79 = vld [vmem:[%s2 + $0xd0] sm:$0xff]
  %v80 = vld [vmem:[%s2 + $0xd8] sm:$0xff]
  %v81 = vld [vmem:[%s2 + $0xe0] sm:$0xff]
  %v82 = vld [vmem:[%s2 + $0xe8] sm:$0xff]
  %v83 = vld [vmem:[%s2 + $0xf0] sm:$0xff]
  %v84 = vld [vmem:[%s2 + $0xf8] sm:$0xff]
  %v85 = vld [vmem:[%s3] sm:$0xff]
  %v86 = vld [vmem:[%s3 + $0x8] sm:$0xff]
  %v87 = vld [vmem:[%s3 + $0x10] sm:$0xff]
  %v88 = vld [vmem:[%s3 + $0x18] sm:$0xff]
  %v89 = vld [vmem:[%s3 + $0x20] sm:$0xff]
  %v90 = vld [vmem:[%s3 + $0x28] sm:$0xff]
  %v91 = vld [vmem:[%s3 + $0x30] sm:$0xff]
  %v92 = vld [vmem:[%s3 + $0x38] sm:$0xff]
  %v93 = vld [vmem:[%s3 + $0x40] sm:$0xff]
  %v94 = vld [vmem:[%s3 + $0x48] sm:$0xff]
  %v95 = vld [vmem:[%s3 + $0x50] sm:$0xff]
  %v96 = vld [vmem:[%s3 + $0x58] sm:$0xff]
  %v97 = vld [vmem:[%s3 + $0x60] sm:$0xff]
  %v98 = vld [vmem:[%s3 + $0x68] sm:$0xff]
  %v99 = vld [vmem:[%s3 + $0x70] sm:$0xff]
  %v100 = vld [vmem:[%s3 + $0x78] sm:$0xff]
  %v101 = vld [vmem:[%s3 + $0x80] sm:$0xff]
  %v102 = vld [vmem:[%s3 + $0x88] sm:$0xff]
  %v103 = vld [vmem:[%s3 + $0x90] sm:$0xff]
  %v104 = vld [vmem:[%s3 + $0x98] sm:$0xff]
  %v105 = vld [vmem:[%s3 + $0xa0] sm:$0xff]
  %v106 = vld [vmem:[%s3 + $0xa8] sm:$0xff]
  %v107 = vld [vmem:[%s3 + $0xb0] sm:$0xff]
  %v108 = vld [vmem:[%s3 + $0xb8] sm:$0xff]
  %v109 = vld [vmem:[%s3 + $0xc0] sm:$0xff]
  %v110 = vld [vmem:[%s3 + $0xc8] sm:$0xff]
  %v111 = vld [vmem:[%s3 + $0xd0] sm:$0xff]
  %v112 = vld [vmem:[%s3 + $0xd8] sm:$0xff]
  %v113 = vld [vmem:[%s3 + $0xe0] sm:$0xff]
  %v114 = vld [vmem:[%s3 + $0xe8] sm:$0xff]
  %v115 = vld [vmem:[%s3 + $0xf0] sm:$0xff]
  %v116 = vld [vmem:[%s3 + $0xf8] sm:$0xff]
  %s117 = sld [smem:[#allocation2]]
  %v118 = vld [vmem:[%s0] sm:$0xff]
  %120 = vset.pattern.permute.xlu0 0
  %121 = vperm.xlu0 %120, %v53
  %v122 = vpop.permute.xlu0 %121
  %125 = vset.pattern.permute.xlu0 0
  %126 = vperm.xlu0 %125, %v54
  %v127 = vpop.permute.xlu0 %126
  %130 = vset.pattern.permute.xlu0 0
  %131 = vperm.xlu0 %130, %v55
  %v132 = vpop.permute.xlu0 %131
  %135 = vset.pattern.permute.xlu0 0
  %136 = vperm.xlu0 %135, %v56
  %v137 = vpop.permute.xlu0 %136
  %140 = vset.pattern.permute.xlu0 0
  %141 = vperm.xlu0 %140, %v57
  %v142 = vpop.permute.xlu0 %141
  %145 = vset.pattern.permute.xlu0 0
  %146 = vperm.xlu0 %145, %v58
  %v147 = vpop.permute.xlu0 %146
  %150 = vset.pattern.permute.xlu0 0
  %151 = vperm.xlu0 %150, %v59
  %v152 = vpop.permute.xlu0 %151
  %155 = vset.pattern.permute.xlu0 0
  %156 = vperm.xlu0 %155, %v60
  %v157 = vpop.permute.xlu0 %156
  %160 = vset.pattern.permute.xlu0 0
  %161 = vperm.xlu0 %160, %v61
  %v162 = vpop.permute.xlu0 %161
  %165 = vset.pattern.permute.xlu0 0
  %166 = vperm.xlu0 %165, %v62
  %v167 = vpop.permute.xlu0 %166
  %170 = vset.pattern.permute.xlu0 0
  %171 = vperm.xlu0 %170, %v63
  %v172 = vpop.permute.xlu0 %171
  %175 = vset.pattern.permute.xlu0 0
  %176 = vperm.xlu0 %175, %v64
  %v177 = vpop.permute.xlu0 %176
  %180 = vset.pattern.permute.xlu0 0
  %181 = vperm.xlu0 %180, %v65
  %v182 = vpop.permute.xlu0 %181
  %185 = vset.pattern.permute.xlu0 0
  %186 = vperm.xlu0 %185, %v66
  %v187 = vpop.permute.xlu0 %186
  %190 = vset.pattern.permute.xlu0 0
  %191 = vperm.xlu0 %190, %v67
  %v192 = vpop.permute.xlu0 %191
  %195 = vset.pattern.permute.xlu0 0
  %196 = vperm.xlu0 %195, %v68
  %v197 = vpop.permute.xlu0 %196
  %200 = vset.pattern.permute.xlu0 0
  %201 = vperm.xlu0 %200, %v69
  %v202 = vpop.permute.xlu0 %201
  %205 = vset.pattern.permute.xlu0 0
  %206 = vperm.xlu0 %205, %v70
  %v207 = vpop.permute.xlu0 %206
  %210 = vset.pattern.permute.xlu0 0
  %211 = vperm.xlu0 %210, %v71
  %v212 = vpop.permute.xlu0 %211
  %215 = vset.pattern.permute.xlu0 0
  %216 = vperm.xlu0 %215, %v72
  %v217 = vpop.permute.xlu0 %216
  %220 = vset.pattern.permute.xlu0 0
  %221 = vperm.xlu0 %220, %v73
  %v222 = vpop.permute.xlu0 %221
  %225 = vset.pattern.permute.xlu0 0
  %226 = vperm.xlu0 %225, %v74
  %v227 = vpop.permute.xlu0 %226
  %230 = vset.pattern.permute.xlu0 0
  %231 = vperm.xlu0 %230, %v75
  %v232 = vpop.permute.xlu0 %231
  %235 = vset.pattern.permute.xlu0 0
  %236 = vperm.xlu0 %235, %v76
  %v237 = vpop.permute.xlu0 %236
  %240 = vset.pattern.permute.xlu0 0
  %241 = vperm.xlu0 %240, %v77
  %v242 = vpop.permute.xlu0 %241
  %245 = vset.pattern.permute.xlu0 0
  %246 = vperm.xlu0 %245, %v78
  %v247 = vpop.permute.xlu0 %246
  %250 = vset.pattern.permute.xlu0 0
  %251 = vperm.xlu0 %250, %v79
  %v252 = vpop.permute.xlu0 %251
  %255 = vset.pattern.permute.xlu0 0
  %256 = vperm.xlu0 %255, %v80
  %v257 = vpop.permute.xlu0 %256
  %260 = vset.pattern.permute.xlu0 0
  %261 = vperm.xlu0 %260, %v81
  %v262 = vpop.permute.xlu0 %261
  %265 = vset.pattern.permute.xlu0 0
  %266 = vperm.xlu0 %265, %v82
  %v267 = vpop.permute.xlu0 %266
  %270 = vset.pattern.permute.xlu0 0
  %271 = vperm.xlu0 %270, %v83
  %v272 = vpop.permute.xlu0 %271
  %275 = vset.pattern.permute.xlu0 0
  %276 = vperm.xlu0 %275, %v84
  %v277 = vpop.permute.xlu0 %276
  %vm279 = vcmask 64512
  %v281 = vsel %vm279, %v21, 0
  %v284 = vsel %vm279, %v22, 0
  %v287 = vsel %vm279, %v23, 0
  %v290 = vsel %vm279, %v24, 0
  %v293 = vsel %vm279, %v25, 0
  %v296 = vsel %vm279, %v26, 0
  %v299 = vsel %vm279, %v27, 0
  %v302 = vsel %vm279, %v28, 0
  %v305 = vsel %vm279, %v29, 0
  %v308 = vsel %vm279, %v30, 0
  %v311 = vsel %vm279, %v31, 0
  %v314 = vsel %vm279, %v32, 0
  %v317 = vsel %vm279, %v33, 0
  %v320 = vsel %vm279, %v34, 0
  %v323 = vsel %vm279, %v35, 0
  %v326 = vsel %vm279, %v36, 0
  %v329 = vsel %vm279, %v37, 0
  %v332 = vsel %vm279, %v38, 0
  %v335 = vsel %vm279, %v39, 0
  %v338 = vsel %vm279, %v40, 0
  %v341 = vsel %vm279, %v41, 0
  %v344 = vsel %vm279, %v42, 0
  %v347 = vsel %vm279, %v43, 0
  %v350 = vsel %vm279, %v44, 0
  %v353 = vsel %vm279, %v45, 0
  %v356 = vsel %vm279, %v46, 0
  %v359 = vsel %vm279, %v47, 0
  %v362 = vsel %vm279, %v48, 0
  %v365 = vsel %vm279, %v49, 0
  %v368 = vsel %vm279, %v50, 0
  %v371 = vsel %vm279, %v51, 0
  %v374 = vsel %vm279, %v52, 0
  %376 = vmatprep.subr.mxu0 0.0
  %377 = vmatpush1.msra.mxu0 %v118
  %378 = vmatprep.subr.mxu0 0.0
  %379 = vmatpush1.msra.mxu0 0.0
  %380 = vmatprep.subr.mxu0 0.0
  %381 = vmatpush1.msra.mxu0 0.0
  %382 = vmatprep.subr.mxu0 0.0
  %383 = vmatpush1.msra.mxu0 0.0
  %384 = vmatprep.subr.mxu0 0.0
  %385 = vmatpush1.msra.mxu0 0.0
  %386 = vmatprep.subr.mxu0 0.0
  %387 = vmatpush1.msra.mxu0 0.0
  %388 = vmatprep.subr.mxu0 0.0
  %389 = vmatpush1.msra.mxu0 0.0
  %390 = vmatprep.subr.mxu0 0.0
  %391 = vmatpush1.msra.mxu0 0.0
  %392 = vmatprep.subr.mxu0 0.0
  %393 = vmatpush1.msra.mxu0 0.0
  %394 = vmatprep.subr.mxu0 0.0
  %395 = vmatpush1.msra.mxu0 0.0
  %396 = vmatprep.subr.mxu0 0.0
  %397 = vmatpush1.msra.mxu0 0.0
  %398 = vmatprep.subr.mxu0 0.0
  %399 = vmatpush1.msra.mxu0 0.0
  %400 = vmatprep.subr.mxu0 0.0
  %401 = vmatpush1.msra.mxu0 0.0
  %402 = vmatprep.subr.mxu0 0.0
  %403 = vmatpush1.msra.mxu0 0.0
  %404 = vmatprep.subr.mxu0 0.0
  %405 = vmatpush1.msra.mxu0 0.0
  %406 = vmatprep.subr.mxu0 0.0
  %407 = vmatpush1.msra.mxu0 0.0
  %408 = vmatprep.subr.mxu0 0.0
  %409 = vmatpush1.msra.mxu0 0.0
  %410 = vmatprep.subr.mxu0 0.0
  %411 = vmatpush1.msra.mxu0 0.0
  %412 = vmatprep.subr.mxu0 0.0
  %413 = vmatpush1.msra.mxu0 0.0
  %414 = vmatprep.subr.mxu0 0.0
  %415 = vmatpush1.msra.mxu0 0.0
  %416 = vmatprep.subr.mxu0 0.0
  %417 = vmatpush1.msra.mxu0 0.0
  %418 = vmatprep.subr.mxu0 0.0
  %419 = vmatpush1.msra.mxu0 0.0
  %420 = vmatprep.subr.mxu0 0.0
  %421 = vmatpush1.msra.mxu0 0.0
  %422 = vmatprep.subr.mxu0 0.0
  %423 = vmatpush1.msra.mxu0 0.0
  %424 = vmatprep.subr.mxu0 0.0
  %425 = vmatpush1.msra.mxu0 0.0
  %426 = vmatprep.subr.mxu0 0.0
  %427 = vmatpush1.msra.mxu0 0.0
  %428 = vmatprep.subr.mxu0 0.0
  %429 = vmatpush1.msra.mxu0 0.0
  %430 = vmatprep.subr.mxu0 0.0
  %431 = vmatpush1.msra.mxu0 0.0
  %432 = vmatprep.subr.mxu0 0.0
  %433 = vmatpush1.msra.mxu0 0.0
  %434 = vmatprep.subr.mxu0 0.0
  %435 = vmatpush1.msra.mxu0 0.0
  %436 = vmatprep.subr.mxu0 0.0
  %437 = vmatpush1.msra.mxu0 0.0
  %438 = vmatprep.subr.mxu0 0.0
  %439 = vmatpush1.msra.mxu0 0.0
  %440 = vmatprep.mubr.f32.mxu0 0.0
  %441 = vmatmul.mubr.f32.gmra.mrb[0].mxu0 %v281
  %v442 = vpop.f32.mrb[0].mxu0
  %v443 = vadd.f32 %v122, %v442
  %v444 = vpop.f32.mrb[0].mxu0
  %445 = vmatprep.mubr.f32.mxu0 0.0
  %446 = vmatmul.mubr.f32.gmra.mrb[0].mxu0 %v284
  %v447 = vpop.f32.mrb[0].mxu0
  %v448 = vadd.f32 %v127, %v447
  %v449 = vpop.f32.mrb[0].mxu0
  %450 = vmatprep.mubr.f32.mxu0 0.0
  %451 = vmatmul.mubr.f32.gmra.mrb[0].mxu0 %v287
  %v452 = vpop.f32.mrb[0].mxu0
  %v453 = vadd.f32 %v132, %v452
  %v454 = vpop.f32.mrb[0].mxu0
  %455 = vmatprep.mubr.f32.mxu0 0.0
  %456 = vmatmul.mubr.f32.gmra.mrb[0].mxu0 %v290
  %v457 = vpop.f32.mrb[0].mxu0
  %v458 = vadd.f32 %v137, %v457
  %v459 = vpop.f32.mrb[0].mxu0
  %460 = vmatprep.mubr.f32.mxu0 0.0
  %461 = vmatmul.mubr.f32.gmra.mrb[0].mxu0 %v293
  %v462 = vpop.f32.mrb[0].mxu0
  %v463 = vadd.f32 %v142, %v462
  %v464 = vpop.f32.mrb[0].mxu0
  %465 = vmatprep.mubr.f32.mxu0 0.0
  %466 = vmatmul.mubr.f32.gmra.mrb[0].mxu0 %v296
  %v467 = vpop.f32.mrb[0].mxu0
  %v468 = vadd.f32 %v147, %v467
  %v469 = vpop.f32.mrb[0].mxu0
  %470 = vmatprep.mubr.f32.mxu0 0.0
  %471 = vmatmul.mubr.f32.gmra.mrb[0].mxu0 %v299
  %v472 = vpop.f32.mrb[0].mxu0
  %v473 = vadd.f32 %v152, %v472
  %v474 = vpop.f32.mrb[0].mxu0
  %475 = vmatprep.mubr.f32.mxu0 0.0
  %476 = vmatmul.mubr.f32.gmra.mrb[0].mxu0 %v302
  %v477 = vpop.f32.mrb[0].mxu0
  %v478 = vadd.f32 %v157, %v477
  %v479 = vpop.f32.mrb[0].mxu0
  %480 = vmatprep.mubr.f32.mxu0 0.0
  %481 = vmatmul.mubr.f32.gmra.mrb[0].mxu0 %v305
  %v482 = vpop.f32.mrb[0].mxu0
  %v483 = vadd.f32 %v162, %v482
  %v484 = vpop.f32.mrb[0].mxu0
  %485 = vmatprep.mubr.f32.mxu0 0.0
  %486 = vmatmul.mubr.f32.gmra.mrb[0].mxu0 %v308
  %v487 = vpop.f32.mrb[0].mxu0
  %v488 = vadd.f32 %v167, %v487
  %v489 = vpop.f32.mrb[0].mxu0
  %490 = vmatprep.mubr.f32.mxu0 0.0
  %491 = vmatmul.mubr.f32.gmra.mrb[0].mxu0 %v311
  %v492 = vpop.f32.mrb[0].mxu0
  %v493 = vadd.f32 %v172, %v492
  %v494 = vpop.f32.mrb[0].mxu0
  %495 = vmatprep.mubr.f32.mxu0 0.0
  %496 = vmatmul.mubr.f32.gmra.mrb[0].mxu0 %v314
  %v497 = vpop.f32.mrb[0].mxu0
  %v498 = vadd.f32 %v177, %v497
  %v499 = vpop.f32.mrb[0].mxu0
  %500 = vmatprep.mubr.f32.mxu0 0.0
  %501 = vmatmul.mubr.f32.gmra.mrb[0].mxu0 %v317
  %v502 = vpop.f32.mrb[0].mxu0
  %v503 = vadd.f32 %v182, %v502
  %v504 = vpop.f32.mrb[0].mxu0
  %505 = vmatprep.mubr.f32.mxu0 0.0
  %506 = vmatmul.mubr.f32.gmra.mrb[0].mxu0 %v320
  %v507 = vpop.f32.mrb[0].mxu0
  %v508 = vadd.f32 %v187, %v507
  %v509 = vpop.f32.mrb[0].mxu0
  %510 = vmatprep.mubr.f32.mxu0 0.0
  %511 = vmatmul.mubr.f32.gmra.mrb[0].mxu0 %v323
  %v512 = vpop.f32.mrb[0].mxu0
  %v513 = vadd.f32 %v192, %v512
  %v514 = vpop.f32.mrb[0].mxu0
  %515 = vmatprep.mubr.f32.mxu0 0.0
  %516 = vmatmul.mubr.f32.gmra.mrb[0].mxu0 %v326
  %v517 = vpop.f32.mrb[0].mxu0
  %v518 = vadd.f32 %v197, %v517
  %v519 = vpop.f32.mrb[0].mxu0
  %520 = vmatprep.mubr.f32.mxu0 0.0
  %521 = vmatmul.mubr.f32.gmra.mrb[0].mxu0 %v329
  %v522 = vpop.f32.mrb[0].mxu0
  %v523 = vadd.f32 %v202, %v522
  %v524 = vpop.f32.mrb[0].mxu0
  %525 = vmatprep.mubr.f32.mxu0 0.0
  %526 = vmatmul.mubr.f32.gmra.mrb[0].mxu0 %v332
  %v527 = vpop.f32.mrb[0].mxu0
  %v528 = vadd.f32 %v207, %v527
  %v529 = vpop.f32.mrb[0].mxu0
  %530 = vmatprep.mubr.f32.mxu0 0.0
  %531 = vmatmul.mubr.f32.gmra.mrb[0].mxu0 %v335
  %v532 = vpop.f32.mrb[0].mxu0
  %v533 = vadd.f32 %v212, %v532
  %v534 = vpop.f32.mrb[0].mxu0
  %535 = vmatprep.mubr.f32.mxu0 0.0
  %536 = vmatmul.mubr.f32.gmra.mrb[0].mxu0 %v338
  %v537 = vpop.f32.mrb[0].mxu0
  %v538 = vadd.f32 %v217, %v537
  %v539 = vpop.f32.mrb[0].mxu0
  %540 = vmatprep.mubr.f32.mxu0 0.0
  %541 = vmatmul.mubr.f32.gmra.mrb[0].mxu0 %v341
  %v542 = vpop.f32.mrb[0].mxu0
  %v543 = vadd.f32 %v222, %v542
  %v544 = vpop.f32.mrb[0].mxu0
  %545 = vmatprep.mubr.f32.mxu0 0.0
  %546 = vmatmul.mubr.f32.gmra.mrb[0].mxu0 %v344
  %v547 = vpop.f32.mrb[0].mxu0
  %v548 = vadd.f32 %v227, %v547
  %v549 = vpop.f32.mrb[0].mxu0
  %550 = vmatprep.mubr.f32.mxu0 0.0
  %551 = vmatmul.mubr.f32.gmra.mrb[0].mxu0 %v347
  %v552 = vpop.f32.mrb[0].mxu0
  %v553 = vadd.f32 %v232, %v552
  %v554 = vpop.f32.mrb[0].mxu0
  %555 = vmatprep.mubr.f32.mxu0 0.0
  %556 = vmatmul.mubr.f32.gmra.mrb[0].mxu0 %v350
  %v557 = vpop.f32.mrb[0].mxu0
  %v558 = vadd.f32 %v237, %v557
  %v559 = vpop.f32.mrb[0].mxu0
  %560 = vmatprep.mubr.f32.mxu0 0.0
  %561 = vmatmul.mubr.f32.gmra.mrb[0].mxu0 %v353
  %v562 = vpop.f32.mrb[0].mxu0
  %v563 = vadd.f32 %v242, %v562
  %v564 = vpop.f32.mrb[0].mxu0
  %565 = vmatprep.mubr.f32.mxu0 0.0
  %566 = vmatmul.mubr.f32.gmra.mrb[0].mxu0 %v356
  %v567 = vpop.f32.mrb[0].mxu0
  %v568 = vadd.f32 %v247, %v567
  %v569 = vpop.f32.mrb[0].mxu0
  %570 = vmatprep.mubr.f32.mxu0 0.0
  %571 = vmatmul.mubr.f32.gmra.mrb[0].mxu0 %v359
  %v572 = vpop.f32.mrb[0].mxu0
  %v573 = vadd.f32 %v252, %v572
  %v574 = vpop.f32.mrb[0].mxu0
  %575 = vmatprep.mubr.f32.mxu0 0.0
  %576 = vmatmul.mubr.f32.gmra.mrb[0].mxu0 %v362
  %v577 = vpop.f32.mrb[0].mxu0
  %v578 = vadd.f32 %v257, %v577
  %v579 = vpop.f32.mrb[0].mxu0
  %580 = vmatprep.mubr.f32.mxu0 0.0
  %581 = vmatmul.mubr.f32.gmra.mrb[0].mxu0 %v365
  %v582 = vpop.f32.mrb[0].mxu0
  %v583 = vadd.f32 %v262, %v582
  %v584 = vpop.f32.mrb[0].mxu0
  %585 = vmatprep.mubr.f32.mxu0 0.0
  %586 = vmatmul.mubr.f32.gmra.mrb[0].mxu0 %v368
  %v587 = vpop.f32.mrb[0].mxu0
  %v588 = vadd.f32 %v267, %v587
  %v589 = vpop.f32.mrb[0].mxu0
  %590 = vmatprep.mubr.f32.mxu0 0.0
  %591 = vmatmul.mubr.f32.gmra.mrb[0].mxu0 %v371
  %v592 = vpop.f32.mrb[0].mxu0
  %v593 = vadd.f32 %v272, %v592
  %v594 = vpop.f32.mrb[0].mxu0
  %595 = vmatprep.mubr.f32.mxu0 0.0
  %596 = vmatmul.mubr.f32.gmra.mrb[0].mxu0 %v374
  %v597 = vpop.f32.mrb[0].mxu0
  %v598 = vadd.f32 %v277, %v597
  %v599 = vpop.f32.mrb[0].mxu0
  %600 = vdwg.mxu0
  %v601 = vmax.f32 %v443, 0.0
  %v602 = vmax.f32 %v448, 0.0
  %v603 = vmax.f32 %v453, 0.0
  %v604 = vmax.f32 %v458, 0.0
  %v605 = vmax.f32 %v463, 0.0
  %v606 = vmax.f32 %v468, 0.0
  %v607 = vmax.f32 %v473, 0.0
  %v608 = vmax.f32 %v478, 0.0
  %v609 = vmax.f32 %v483, 0.0
  %v610 = vmax.f32 %v488, 0.0
  %v611 = vmax.f32 %v493, 0.0
  %v612 = vmax.f32 %v498, 0.0
  %v613 = vmax.f32 %v503, 0.0
  %v614 = vmax.f32 %v508, 0.0
  %v615 = vmax.f32 %v513, 0.0
  %v616 = vmax.f32 %v518, 0.0
  %v617 = vmax.f32 %v523, 0.0
  %v618 = vmax.f32 %v528, 0.0
  %v619 = vmax.f32 %v533, 0.0
  %v620 = vmax.f32 %v538, 0.0
  %v621 = vmax.f32 %v543, 0.0
  %v622 = vmax.f32 %v548, 0.0
  %v623 = vmax.f32 %v553, 0.0
  %v624 = vmax.f32 %v558, 0.0
  %v625 = vmax.f32 %v563, 0.0
  %v626 = vmax.f32 %v568, 0.0
  %v627 = vmax.f32 %v573, 0.0
  %v628 = vmax.f32 %v578, 0.0
  %v629 = vmax.f32 %v583, 0.0
  %v630 = vmax.f32 %v588, 0.0
  %v631 = vmax.f32 %v593, 0.0
  %v632 = vmax.f32 %v598, 0.0
  %634 = vset.pattern.permute.xlu0 0
  %635 = vperm.xlu0 %634, %v85
  %v636 = vpop.permute.xlu0 %635
  %639 = vset.pattern.permute.xlu0 0
  %640 = vperm.xlu0 %639, %v86
  %v641 = vpop.permute.xlu0 %640
  %644 = vset.pattern.permute.xlu0 0
  %645 = vperm.xlu0 %644, %v87
  %v646 = vpop.permute.xlu0 %645
  %649 = vset.pattern.permute.xlu0 0
  %650 = vperm.xlu0 %649, %v88
  %v651 = vpop.permute.xlu0 %650
  %654 = vset.pattern.permute.xlu0 0
  %655 = vperm.xlu0 %654, %v89
  %v656 = vpop.permute.xlu0 %655
  %659 = vset.pattern.permute.xlu0 0
  %660 = vperm.xlu0 %659, %v90
  %v661 = vpop.permute.xlu0 %660
  %664 = vset.pattern.permute.xlu0 0
  %665 = vperm.xlu0 %664, %v91
  %v666 = vpop.permute.xlu0 %665
  %669 = vset.pattern.permute.xlu0 0
  %670 = vperm.xlu0 %669, %v92
  %v671 = vpop.permute.xlu0 %670
  %674 = vset.pattern.permute.xlu0 0
  %675 = vperm.xlu0 %674, %v93
  %v676 = vpop.permute.xlu0 %675
  %679 = vset.pattern.permute.xlu0 0
  %680 = vperm.xlu0 %679, %v94
  %v681 = vpop.permute.xlu0 %680
  %684 = vset.pattern.permute.xlu0 0
  %685 = vperm.xlu0 %684, %v95
  %v686 = vpop.permute.xlu0 %685
  %689 = vset.pattern.permute.xlu0 0
  %690 = vperm.xlu0 %689, %v96
  %v691 = vpop.permute.xlu0 %690
  %694 = vset.pattern.permute.xlu0 0
  %695 = vperm.xlu0 %694, %v97
  %v696 = vpop.permute.xlu0 %695
  %699 = vset.pattern.permute.xlu0 0
  %700 = vperm.xlu0 %699, %v98
  %v701 = vpop.permute.xlu0 %700
  %704 = vset.pattern.permute.xlu0 0
  %705 = vperm.xlu0 %704, %v99
  %v706 = vpop.permute.xlu0 %705
  %709 = vset.pattern.permute.xlu0 0
  %710 = vperm.xlu0 %709, %v100
  %v711 = vpop.permute.xlu0 %710
  %714 = vset.pattern.permute.xlu0 0
  %715 = vperm.xlu0 %714, %v101
  %v716 = vpop.permute.xlu0 %715
  %719 = vset.pattern.permute.xlu0 0
  %720 = vperm.xlu0 %719, %v102
  %v721 = vpop.permute.xlu0 %720
  %724 = vset.pattern.permute.xlu0 0
  %725 = vperm.xlu0 %724, %v103
  %v726 = vpop.permute.xlu0 %725
  %729 = vset.pattern.permute.xlu0 0
  %730 = vperm.xlu0 %729, %v104
  %v731 = vpop.permute.xlu0 %730
  %734 = vset.pattern.permute.xlu0 0
  %735 = vperm.xlu0 %734, %v105
  %v736 = vpop.permute.xlu0 %735
  %739 = vset.pattern.permute.xlu0 0
  %740 = vperm.xlu0 %739, %v106
  %v741 = vpop.permute.xlu0 %740
  %744 = vset.pattern.permute.xlu0 0
  %745 = vperm.xlu0 %744, %v107
  %v746 = vpop.permute.xlu0 %745
  %749 = vset.pattern.permute.xlu0 0
  %750 = vperm.xlu0 %749, %v108
  %v751 = vpop.permute.xlu0 %750
  %754 = vset.pattern.permute.xlu0 0
  %755 = vperm.xlu0 %754, %v109
  %v756 = vpop.permute.xlu0 %755
  %759 = vset.pattern.permute.xlu0 0
  %760 = vperm.xlu0 %759, %v110
  %v761 = vpop.permute.xlu0 %760
  %764 = vset.pattern.permute.xlu0 0
  %765 = vperm.xlu0 %764, %v111
  %v766 = vpop.permute.xlu0 %765
  %769 = vset.pattern.permute.xlu0 0
  %770 = vperm.xlu0 %769, %v112
  %v771 = vpop.permute.xlu0 %770
  %774 = vset.pattern.permute.xlu0 0
  %775 = vperm.xlu0 %774, %v113
  %v776 = vpop.permute.xlu0 %775
  %779 = vset.pattern.permute.xlu0 0
  %780 = vperm.xlu0 %779, %v114
  %v781 = vpop.permute.xlu0 %780
  %784 = vset.pattern.permute.xlu0 0
  %785 = vperm.xlu0 %784, %v115
  %v786 = vpop.permute.xlu0 %785
  %789 = vset.pattern.permute.xlu0 0
  %790 = vperm.xlu0 %789, %v116
  %v791 = vpop.permute.xlu0 %790
  %v793 = vmul.f32 %v601, %v636
  %v794 = vmul.f32 %v602, %v641
  %v795 = vmul.f32 %v603, %v646
  %v796 = vmul.f32 %v604, %v651
  %v797 = vmul.f32 %v605, %v656
  %v798 = vmul.f32 %v606, %v661
  %v799 = vmul.f32 %v607, %v666
  %v800 = vmul.f32 %v608, %v671
  %v801 = vmul.f32 %v609, %v676
  %v802 = vmul.f32 %v610, %v681
  %v803 = vmul.f32 %v611, %v686
  %v804 = vmul.f32 %v612, %v691
  %v805 = vmul.f32 %v613, %v696
  %v806 = vmul.f32 %v614, %v701
  %v807 = vmul.f32 %v615, %v706
  %v808 = vmul.f32 %v616, %v711
  %v809 = vmul.f32 %v617, %v716
  %v810 = vmul.f32 %v618, %v721
  %v811 = vmul.f32 %v619, %v726
  %v812 = vmul.f32 %v620, %v731
  %v813 = vmul.f32 %v621, %v736
  %v814 = vmul.f32 %v622, %v741
  %v815 = vmul.f32 %v623, %v746
  %v816 = vmul.f32 %v624, %v751
  %v817 = vmul.f32 %v625, %v756
  %v818 = vmul.f32 %v626, %v761
  %v819 = vmul.f32 %v627, %v766
  %v820 = vmul.f32 %v628, %v771
  %v821 = vmul.f32 %v629, %v776
  %v822 = vmul.f32 %v630, %v781
  %v823 = vmul.f32 %v631, %v786
  %v824 = vmul.f32 %v632, %v791
  %v825 = vadd.f32 %v793, %v794
  %v826 = vadd.f32 %v825, %v795
  %v827 = vadd.f32 %v826, %v796
  %v828 = vadd.f32 %v827, %v797
  %v829 = vadd.f32 %v828, %v798
  %v830 = vadd.f32 %v829, %v799
  %v831 = vadd.f32 %v830, %v800
  %v832 = vadd.f32 %v831, %v801
  %v833 = vadd.f32 %v832, %v802
  %v834 = vadd.f32 %v833, %v803
  %v835 = vadd.f32 %v834, %v804
  %v836 = vadd.f32 %v835, %v805
  %v837 = vadd.f32 %v836, %v806
  %v838 = vadd.f32 %v837, %v807
  %v839 = vadd.f32 %v838, %v808
  %v840 = vrot.slane %v839, 4
  %v841 = vadd.f32 %v839, %v840
  %v842 = vrot.slane %v841, 2
  %v843 = vadd.f32 %v841, %v842
  %v844 = vrot.slane %v843, 1
  %v845 = vadd.f32 %v843, %v844
  %v846 = vstv %s117
  %v847 = vadd.f32 %v845, %v846
  %v848 = vadd.f32 %v809, %v810
  %v849 = vadd.f32 %v848, %v811
  %v850 = vadd.f32 %v849, %v812
  %v851 = vadd.f32 %v850, %v813
  %v852 = vadd.f32 %v851, %v814
  %v853 = vadd.f32 %v852, %v815
  %v854 = vadd.f32 %v853, %v816
  %v855 = vadd.f32 %v854, %v817
  %v856 = vadd.f32 %v855, %v818
  %v857 = vadd.f32 %v856, %v819
  %v858 = vadd.f32 %v857, %v820
  %v859 = vadd.f32 %v858, %v821
  %v860 = vadd.f32 %v859, %v822
  %v861 = vadd.f32 %v860, %v823
  %v862 = vadd.f32 %v861, %v824
  %v863 = vrot.slane %v862, 4
  %v864 = vadd.f32 %v862, %v863
  %v865 = vrot.slane %v864, 2
  %v866 = vadd.f32 %v864, %v865
  %v867 = vrot.slane %v866, 1
  %v868 = vadd.f32 %v866, %v867
  %v869 = vadd.f32 %v868, %v846
  %vm870 = vcmask 1040384
  %v871 = vsel %vm870, %v847, %v869
  %872 = vst [vmem:[%s5] sm:$0x3] %v871
  // Predicated region
  $region22: #{mlp_forward.1} parent=0 // pred_check
    _
  $region23: #{mlp_forward.1} parent=0 // pred_check_branch
    %874 = sbr.rel (0) target = $region25
  $region24: #{mlp_forward.1} parent=0 // pred_region
    _
  $region25: #{mlp_forward.1} parent=0 // pred_fallthru
    _
  // Predicated region
  $region26: #{mlp_forward.1} parent=0 // pred_check
    _
  $region27: #{mlp_forward.1} parent=0 // pred_check_branch
    %876 = sbr.rel (0) target = $region29
  $region28: #{mlp_forward.1} parent=0 // pred_region
    _
  $region29: #{mlp_forward.1} parent=0 // pred_fallthru
    _

</llo_original>
